<compile_context>
chip_gen: v7x
topology: tpu7x:2x2x1
jax: 0.10.0
libtpu: 0.0.40
codegen_flags: <defaults>
</compile_context>

<pallas_src>
import numpy as np
import jax
import jax.numpy as jnp
from jax.experimental import pallas as pl
from jax.experimental.pallas import tpu as pltpu


# ---------------------------------------------------------------------------
# Deterministic parameter construction
# ---------------------------------------------------------------------------
def _bilinear_matrix(in_size: int, out_size: int) -> np.ndarray:
    """Separable bilinear-interpolation matrix (out_size, in_size).
    # TODO(synk): torchvision Resize's antialias low-pass filter is not replicated.
    """
    mat = np.zeros((out_size, in_size), dtype=np.float32)
    scale = in_size / out_size
    for i in range(out_size):
        src = (i + 0.5) * scale - 0.5
        src = min(max(src, 0.0), in_size - 1.0)
        lo = int(np.floor(src))
        hi = min(lo + 1, in_size - 1)
        w_hi = src - lo
        mat[i, lo] += 1.0 - w_hi
        mat[i, hi] += w_hi
    return mat


def make_params(key, *, in_h, in_w, img_size, channels, d_hidden, d_out):
    k1, k2 = jax.random.split(key)
    rh = jnp.asarray(_bilinear_matrix(in_h, img_size))              # (S, H)
    rwT = jnp.asarray(_bilinear_matrix(in_w, img_size)).T           # (W, S)
    w1 = jax.random.normal(k1, (channels, img_size, d_hidden), jnp.float32) * 0.1
    w2 = jax.random.normal(k2, (d_hidden, d_out), jnp.float32) * 0.1
    return dict(rh=rh, rwT=rwT, w1=w1, w2=w2)


# ---------------------------------------------------------------------------
# Pallas kernel: one block of `block_b` images per grid step
#   x_ref   : (C, Bb, W, H)  bf16   channel-major, H innermost (flat height dot)
#   rht_ref : (H, S)         bf16   Rh^T (height resize)
#   rwt_ref : (W, S)         bf16   Rw^T (width resize)
#   w1_ref  : (C, S, De)     bf16   [W1 | W1_flip] (De = 2*Dh when flip)
#   w2_ref  : (De, Dp)       bf16   [W2; W2] with mean-pool & 0.5 scales folded,
#                                   lane-padded to Dp = multiple of 128
#   out_ref : (1, Bb, Dp)    f32
# ---------------------------------------------------------------------------
def _blackbox_encoder_kernel(x_ref, rht_ref, rwt_ref, w1_ref, w2_ref, out_ref):
    C, Bb, W, H = x_ref.shape
    S = rwt_ref.shape[1]
    De = w1_ref.shape[-1]
    cdt = x_ref.dtype

    def per_channel(c, acc):
        xc = x_ref[c]                                               # (Bb, W, H)

        # (1) Height resize: one flat 2D matmul (M = Bb*W, K = H, N = S).
        v = jnp.dot(xc.reshape(Bb * W, H), rht_ref[...],
                    preferred_element_type=jnp.float32)             # (Bb*W, S)
        v = v.reshape(Bb, W, S)
        # One f32 XLU transpose per channel (the only layout op in the chain).
        v = jnp.swapaxes(v, 1, 2)                                   # (Bb, S, W)
        v = v.astype(cdt).reshape(Bb * S, W)

        # (2) Width resize: flat 2D matmul (M = Bb*S, K = W, N = S).
        r = jnp.dot(v, rwt_ref[...],
                    preferred_element_type=jnp.float32)             # (Bb*S, S)

        # (3) Encoder linear: normal + flipped paths in ONE matmul via
        #     [W1 | W1_flip]; ReLU; sum-pool over resized rows.
        h = jnp.dot(r.astype(cdt), w1_ref[c],
                    preferred_element_type=jnp.float32)             # (Bb*S, De)
        h = jnp.maximum(h, 0.0).reshape(Bb, S, De)
        return acc + jnp.sum(h, axis=1)                             # (Bb, De)

    # fori_loop bounds the live f32 intermediates to a single channel's worth.
    acc = jax.lax.fori_loop(0, C, per_channel,
                            jnp.zeros((Bb, De), jnp.float32))

    # (4) Final linear: mean-pool 1/(C*S) and 0.5 flip-average are pre-folded
    #     into W2; bf16 x bf16 dot; lane-dense (Bb, Dp) f32 store.
    out_ref[0] = jnp.dot(acc.astype(w2_ref.dtype), w2_ref[...],
                         preferred_element_type=jnp.float32)


# ---------------------------------------------------------------------------
# Wrapper
# ---------------------------------------------------------------------------
def blackbox_encoder(x, params, *, img_size, flip=True, block_b=8):
    B, C, H, W = x.shape
    S = img_size
    assert B % block_b == 0, "batch must be divisible by block_b"
    G = B // block_b
    # NOTE: block_b should stay a multiple of 8.  v6e (128 MiB VMEM, 1 TC) can
    # go 16+; v7x (64 MiB, 2 TCs) wants ~half of that and G >= 2 so both
    # TensorCores get grid steps; v5e is HBM-bound -> consider
    # pipeline_mode=pl.Buffered(3) on the x BlockSpec if the DMA is exposed.

    rhT = params["rh"].T.astype(jnp.bfloat16)                       # (H, S)
    rwT = params["rwT"].astype(jnp.bfloat16)                        # (W, S)
    w1 = params["w1"]                                               # (C, S, Dh)
    w2 = params["w2"]                                               # (Dh, D)
    Dh, D = w2.shape

    if flip:
        # RandomHorizontalFlip(p=1.0) on the resized image == reversing the
        # resized-width axis of W1; concatenating along the hidden dim lets a
        # single matmul cover both paths, and stacking W2 avoids any lane
        # slice/add in the kernel.
        w1_eff = jnp.concatenate([w1, w1[:, ::-1, :]], axis=-1)     # (C, S, 2Dh)
        w2_stack = jnp.concatenate([w2, w2], axis=0)                # (2Dh, D)
    else:
        w1_eff, w2_stack = w1, w2
    De = w1_eff.shape[-1]

    # Fold mean-pool 1/(C*S) and the 0.5 flip averaging into W2; pad the
    # output width to a lane-dense multiple of 128 (unmasked vst).
    Dp = max(128, ((D + 127) // 128) * 128)
    scale = (0.5 if flip else 1.0) / float(C * S)
    w2_eff = jnp.zeros((De, Dp), jnp.float32).at[:, :D].set(w2_stack * scale)
    w2_eff = w2_eff.astype(jnp.bfloat16)
    w1_eff = w1_eff.astype(jnp.bfloat16)

    # (C, B, W, H) layout: channel-major so per-channel work is plain 2D dots,
    # H innermost so the height resize is a flat last-dim contraction.
    xt = jnp.transpose(x, (1, 0, 3, 2)).astype(jnp.bfloat16)        # (C, B, W, H)

    # Explicit scoped-VMEM budget: double-buffered x block + resident weights
    # + per-channel f32 intermediates (generous) + headroom, clamped to the
    # v7x physical limit.
    x_block = C * block_b * W * H * 2
    weights = (H * S + W * S + C * S * De + De * Dp) * 2
    interm = 4 * block_b * (2 * W * S + S * S + S * De + De) * 4
    out_block = block_b * Dp * 4
    est = 2 * x_block + weights + interm + 2 * out_block + (4 << 20)
    vmem_limit = int(min(max(est, 32 << 20), 64 << 20))

    flops = 2 * B * C * (W * H * S + S * W * S + S * S * De) + 2 * B * De * Dp
    bytes_accessed = xt.size * 2 + weights + B * Dp * 4

    out = pl.pallas_call(
        _blackbox_encoder_kernel,
        out_shape=jax.ShapeDtypeStruct((G, block_b, Dp), jnp.float32),
        grid=(G,),
        in_specs=[
            pl.BlockSpec((C, block_b, W, H), lambda g: (0, g, 0, 0)),   # x block
            pl.BlockSpec((H, S), lambda g: (0, 0)),                     # Rh^T
            pl.BlockSpec((W, S), lambda g: (0, 0)),                     # Rw^T
            pl.BlockSpec((C, S, De), lambda g: (0, 0, 0)),              # [W1|W1_flip]
            pl.BlockSpec((De, Dp), lambda g: (0, 0)),                   # W2 (scaled)
        ],
        out_specs=pl.BlockSpec((1, block_b, Dp), lambda g: (g, 0, 0)),
        compiler_params=pltpu.CompilerParams(
            dimension_semantics=("parallel",),
            vmem_limit_bytes=vmem_limit),
        cost_estimate=pl.CostEstimate(
            flops=int(flops), transcendentals=0,
            bytes_accessed=int(bytes_accessed)),
    )(xt, rhT, rwT, w1_eff, w2_eff)

    out = out.reshape(B, Dp)[:, :D]
    # @torch.no_grad() -> block gradients through the blackbox encoder.
    return jax.lax.stop_gradient(out)


# ---------------------------------------------------------------------------
# Plain-JAX reference (correctness check).  Uses the straightforward
# resize -> encode -> flip -> encode -> average path (so it independently
# validates the W1 flip-folding); inputs / weights / resize intermediates are
# rounded through bf16 at the same points as the kernel.
# ---------------------------------------------------------------------------
def reference(x, params, *, flip=True):
    as_bf = lambda a: a.astype(jnp.bfloat16).astype(jnp.float32)
    xc = as_bf(x)
    rh, rwT = as_bf(params["rh"]), as_bf(params["rwT"])
    w1, w2 = as_bf(params["w1"]), as_bf(params["w2"])

    # bilinear resize: height first, then width (matches kernel order/rounding)
    v = as_bf(jnp.einsum("sh,bchw->bcsw", rh, xc))                  # (B,C,S,W)
    r = as_bf(jnp.einsum("bcsw,wt->bcst", v, rwT))                  # (B,C,S,S)

    def enc(img):
        h = jax.nn.relu(jnp.einsum("bcsw,cwd->bcsd", img, w1))
        pooled = h.mean(axis=(1, 2))                                # (B, Dh)
        return pooled @ w2                                          # (B, D)

    out = enc(r)
    if flip:
        out = 0.5 * out + 0.5 * enc(r[..., ::-1])                   # hflip
    return out


# ---------------------------------------------------------------------------
if __name__ == "__main__":
    B, C, H, W = 16, 3, 16, 16
    IMG_SIZE = 8        # resize target (small stand-in for 112)
    D_HIDDEN = 32
    D_OUT = 32

    key = jax.random.PRNGKey(0)
    kx, kp = jax.random.split(key)
    x = jax.random.normal(kx, (B, C, H, W), jnp.float32)
    params = make_params(kp, in_h=H, in_w=W, img_size=IMG_SIZE,
                         channels=C, d_hidden=D_HIDDEN, d_out=D_OUT)

    # flip=True path (2 grid steps -> both v7x TensorCores active)
    out = blackbox_encoder(x, params, img_size=IMG_SIZE, flip=True, block_b=8)
    out = jax.block_until_ready(out)
    ref = reference(x, params, flip=True)
    np.testing.assert_allclose(np.asarray(out), np.asarray(ref),
                               rtol=2e-2, atol=2e-2)

    # flip=False path (De = Dh, no W1/W2 duplication)
    out_nf = blackbox_encoder(x, params, img_size=IMG_SIZE, flip=False, block_b=8)
    out_nf = jax.block_until_ready(out_nf)
    ref_nf = reference(x, params, flip=False)
    np.testing.assert_allclose(np.asarray(out_nf), np.asarray(ref_nf),
                               rtol=2e-2, atol=2e-2)

    print("KERNEL_OK")
</pallas_src>

<mosaic_0001>
module attributes {stable_mosaic.version = 11 : i64} {
  func.func @_blackbox_encoder_kernel(%arg0: i32, %arg1: memref<3x8x16x16xbf16, #tpu.memory_space<vmem>>, %arg2: memref<16x8xbf16, #tpu.memory_space<vmem>>, %arg3: memref<16x8xbf16, #tpu.memory_space<vmem>>, %arg4: memref<3x8x64xbf16, #tpu.memory_space<vmem>>, %arg5: memref<64x128xbf16, #tpu.memory_space<vmem>>, %arg6: memref<1x8x128xf32, #tpu.memory_space<vmem>>) attributes {dimension_semantics = [#tpu.dimension_semantics<parallel>], iteration_bounds = array<i64: 2>, scalar_prefetch = 0 : i64, scratch_operands = 0 : i64, tpu.core_type = #tpu.core_type<tc>, window_params = [{transform_indices = @transform_0, window_bounds = array<i64: 3, 8, 16, 16>}, {pipeline_mode = #tpu.pipeline_mode<synchronous>, transform_indices = @transform_1, window_bounds = array<i64: 16, 8>}, {pipeline_mode = #tpu.pipeline_mode<synchronous>, transform_indices = @transform_2, window_bounds = array<i64: 16, 8>}, {pipeline_mode = #tpu.pipeline_mode<synchronous>, transform_indices = @transform_3, window_bounds = array<i64: 3, 8, 64>}, {pipeline_mode = #tpu.pipeline_mode<synchronous>, transform_indices = @transform_4, window_bounds = array<i64: 64, 128>}, {transform_indices = @transform_5, window_bounds = array<i64: 1, 8, 128>}]} {
    %cst = arith.constant 0.000000e+00 : f32
    %0 = vector.broadcast %cst : f32 to vector<8x64xf32>
    %c0_i32 = arith.constant 0 : i32
    %c3_i32 = arith.constant 3 : i32
    %1 = arith.addi %c0_i32, %c3_i32 : i32
    %c1_i32 = arith.constant 1 : i32
    %2 = scf.for %arg7 = %c0_i32 to %1 step %c1_i32 iter_args(%arg8 = %0) -> (vector<8x64xf32>)  : i32 {
      %9 = arith.index_cast %arg7 : i32 to index
      %c0_6 = arith.constant 0 : index
      %c0_7 = arith.constant 0 : index
      %c0_8 = arith.constant 0 : index
      %10 = vector.load %arg1[%9, %c0_6, %c0_7, %c0_8] : memref<3x8x16x16xbf16, #tpu.memory_space<vmem>>, vector<1x8x16x16xbf16>
      %11 = vector.shape_cast %10 : vector<1x8x16x16xbf16> to vector<8x16x16xbf16>
      %12 = vector.shape_cast %11 : vector<8x16x16xbf16> to vector<128x16xbf16>
      %c0_9 = arith.constant 0 : index
      %c0_10 = arith.constant 0 : index
      %13 = vector.load %arg2[%c0_9, %c0_10] : memref<16x8xbf16, #tpu.memory_space<vmem>>, vector<16x8xbf16>
      %cst_11 = arith.constant dense<0.000000e+00> : vector<128x8xf32>
      %14 = tpu.matmul %12, %13, %cst_11 {dimension_numbers = #tpu.dot_dimension_numbers<[1], [0], [0], [1], [0, 0, 1, 1], [], []>} : vector<128x16xbf16>, vector<16x8xbf16>, vector<128x8xf32> -> vector<128x8xf32>
      %15 = vector.shape_cast %14 : vector<128x8xf32> to vector<8x16x8xf32>
      %16 = tpu.transpose %15, [0, 2, 1] : vector<8x16x8xf32> -> vector<8x8x16xf32>
      %17 = arith.truncf %16 : vector<8x8x16xf32> to vector<8x8x16xbf16>
      %18 = vector.shape_cast %17 : vector<8x8x16xbf16> to vector<64x16xbf16>
      %c0_12 = arith.constant 0 : index
      %c0_13 = arith.constant 0 : index
      %19 = vector.load %arg3[%c0_12, %c0_13] : memref<16x8xbf16, #tpu.memory_space<vmem>>, vector<16x8xbf16>
      %cst_14 = arith.constant dense<0.000000e+00> : vector<64x8xf32>
      %20 = tpu.matmul %18, %19, %cst_14 {dimension_numbers = #tpu.dot_dimension_numbers<[1], [0], [0], [1], [0, 0, 1, 1], [], []>} : vector<64x16xbf16>, vector<16x8xbf16>, vector<64x8xf32> -> vector<64x8xf32>
      %21 = arith.truncf %20 : vector<64x8xf32> to vector<64x8xbf16>
      %22 = arith.index_cast %arg7 : i32 to index
      %c0_15 = arith.constant 0 : index
      %c0_16 = arith.constant 0 : index
      %23 = vector.load %arg4[%22, %c0_15, %c0_16] : memref<3x8x64xbf16, #tpu.memory_space<vmem>>, vector<1x8x64xbf16>
      %24 = vector.shape_cast %23 : vector<1x8x64xbf16> to vector<8x64xbf16>
      %cst_17 = arith.constant dense<0.000000e+00> : vector<64x64xf32>
      %25 = tpu.matmul %21, %24, %cst_17 {dimension_numbers = #tpu.dot_dimension_numbers<[1], [0], [0], [1], [0, 0, 1, 1], [], []>} : vector<64x8xbf16>, vector<8x64xbf16>, vector<64x64xf32> -> vector<64x64xf32>
      %cst_18 = arith.constant 0.000000e+00 : f32
      %26 = vector.broadcast %cst_18 : f32 to vector<64x64xf32>
      %27 = arith.maximumf %25, %26 : vector<64x64xf32>
      %28 = vector.shape_cast %27 : vector<64x64xf32> to vector<8x8x64xf32>
      %cst_19 = arith.constant dense<0.000000e+00> : vector<8x64xf32>
      %29 = vector.multi_reduction <add>, %28, %cst_19 [1] : vector<8x8x64xf32> to vector<8x64xf32>
      %30 = arith.addf %arg8, %29 : vector<8x64xf32>
      scf.yield %30 : vector<8x64xf32>
    }
    %c3_i32_0 = arith.constant 3 : i32
    %3 = arith.truncf %2 : vector<8x64xf32> to vector<8x64xbf16>
    %c0 = arith.constant 0 : index
    %c0_1 = arith.constant 0 : index
    %4 = vector.load %arg5[%c0, %c0_1] : memref<64x128xbf16, #tpu.memory_space<vmem>>, vector<64x128xbf16>
    %cst_2 = arith.constant dense<0.000000e+00> : vector<8x128xf32>
    %5 = tpu.matmul %3, %4, %cst_2 {dimension_numbers = #tpu.dot_dimension_numbers<[1], [0], [0], [1], [0, 0, 1, 1], [], []>} : vector<8x64xbf16>, vector<64x128xbf16>, vector<8x128xf32> -> vector<8x128xf32>
    %c0_3 = arith.constant 0 : index
    %c0_4 = arith.constant 0 : index
    %c0_5 = arith.constant 0 : index
    %6 = vector.load %arg6[%c0_3, %c0_4, %c0_5] : memref<1x8x128xf32, #tpu.memory_space<vmem>>, vector<1x8x128xf32>
    %7 = vector.shape_cast %6 : vector<1x8x128xf32> to vector<8x128xf32>
    %8 = vector.shape_cast %5 : vector<8x128xf32> to vector<1x8x128xf32>
    tpu.vector_store %arg6[%c0_3, %c0_4, %c0_5], %8 {strides = array<i32>} : memref<1x8x128xf32, #tpu.memory_space<vmem>>, vector<1x8x128xf32>,
    return
  }
  func.func @transform_0(%arg0: i32) -> (i32, i32, i32, i32) {
    %c0_i32 = arith.constant 0 : i32
    %c0_i32_0 = arith.constant 0 : i32
    %c0_i32_1 = arith.constant 0 : i32
    %c0_i32_2 = arith.constant 0 : i32
    return %c0_i32, %arg0, %c0_i32_0, %c0_i32_1 : i32, i32, i32, i32
  }
  func.func @transform_1(%arg0: i32) -> (i32, i32) {
    %c0_i32 = arith.constant 0 : i32
    %c0_i32_0 = arith.constant 0 : i32
    %c0_i32_1 = arith.constant 0 : i32
    return %c0_i32, %c0_i32_0 : i32, i32
  }
  func.func @transform_2(%arg0: i32) -> (i32, i32) {
    %c0_i32 = arith.constant 0 : i32
    %c0_i32_0 = arith.constant 0 : i32
    %c0_i32_1 = arith.constant 0 : i32
    return %c0_i32, %c0_i32_0 : i32, i32
  }
  func.func @transform_3(%arg0: i32) -> (i32, i32, i32) {
    %c0_i32 = arith.constant 0 : i32
    %c0_i32_0 = arith.constant 0 : i32
    %c0_i32_1 = arith.constant 0 : i32
    %c0_i32_2 = arith.constant 0 : i32
    return %c0_i32, %c0_i32_0, %c0_i32_1 : i32, i32, i32
  }
  func.func @transform_4(%arg0: i32) -> (i32, i32) {
    %c0_i32 = arith.constant 0 : i32
    %c0_i32_0 = arith.constant 0 : i32
    %c0_i32_1 = arith.constant 0 : i32
    return %c0_i32, %c0_i32_0 : i32, i32
  }
  func.func @transform_5(%arg0: i32) -> (i32, i32, i32) {
    %c0_i32 = arith.constant 0 : i32
    %c0_i32_0 = arith.constant 0 : i32
    %c0_i32_1 = arith.constant 0 : i32
    return %arg0, %c0_i32, %c0_i32_0 : i32, i32, i32
  }
}

</mosaic_0001>

<llo_original>
// kernel: tpu_custom_call.1
$region0: #{tpu_custom_call.1}
  #allocation0 [shape = 'u32[]', space=smem, size = 0x4, offset = 0x4, fixed_abs, tag = 'smem constant byte address 0x4 - core index']
  #allocation1 [shape = 'u32[144,128]{1,0:T(1,128)}', space=vmem, size = 0x12000, scoped, tag = 'internal scratch']
  #allocation8 [shape = 's32[]', space=sflag, size = 0x4, offset = 0, fixed_abs, tag = 'sflag constant byte address 0x0 - dummy sync flag']
  %s0 = inlined_call_operand.hbm [shape: bf16[3,16,16,16], index: 0, kind: input, shape index: {}]
  %s1 = inlined_call_operand.vmem [shape: bf16[16,8], index: 1, kind: input, shape index: {}]
  %s2 = inlined_call_operand.vmem [shape: bf16[16,8], index: 2, kind: input, shape index: {}]
  %s3 = inlined_call_operand.hbm [shape: bf16[3,8,64], index: 3, kind: input, shape index: {}]
  %s4 = inlined_call_operand.vmem [shape: bf16[64,128], index: 4, kind: input, shape index: {}]
  %s5 = inlined_call_operand.hbm [shape: f32[2,8,128], index: 5, kind: output, shape index: {}]
  %s6 = sld [smem:[#allocation0]]
  $region68: #{tpu_custom_call.1} parent=0
    _
  %s8 = ssub.s32 1, %s6
  %s9 = scalar_select 0, %s8, %s6
  $region1: #{tpu_custom_call.1} parent=0
    #allocation2 [shape = 'u8[196608]{0}', space=vmem, size = 0x30000, scoped, tag = 'input window, operand 0']
    #allocation3 [shape = 's32[2]{0}', space=sflag, size = 0x8, scoped, tag = 'scoped memory for tpu_custom_call.1']
    #allocation4 [shape = 's32[2]{0}', space=sflag, size = 0x8, scoped, tag = 'scoped memory for tpu_custom_call.1']
    #allocation5 [shape = 'u8[6144]{0}', space=vmem, size = 0x1800, scoped, tag = 'input window, operand 3, single buffered']
    #allocation6 [shape = 's32[1]{0}', space=sflag, size = 0x4, scoped, tag = 'scoped memory for tpu_custom_call.1']
    #allocation7 [shape = 'u8[8192]{0}', space=vmem, size = 0x2000, scoped, tag = 'output window, operand 0']
    %10 = vsyncpa [#allocation3], 0
    %s11 = scalar_lea.sflag [#allocation3], 1
    %12 = vsyncpa %s11, 0
    %13 = vsyncpa [#allocation6], 0
    %14 = vsyncpa [#allocation4], 0
    %s15 = scalar_lea.sflag [#allocation4], 1
    %16 = vsyncpa %s15, 0
    loop: start=0, step=1, limit=4
    $region2: #{tpu_custom_call.1} parent=1 // loop_pre_header
      _
    $region3: #{tpu_custom_call.1} parent=1 // loop_header
      %s18 = sphi 0, %s22
      %p19 = scmp.ge.s32.totalorder %s18, 4
      %s28 = sphi 0, %s30
      %s31 = sphi 0, %s28
      %s32 = sphi 0, %s31
      %s48 = sphi 0, %s32
      %s52 = sphi 0, %s52
      %s54 = sphi 0, %s52
      %s55 = sphi 0, %s54
      %s69 = sphi 0, %s55
      %s73 = sphi 0, %s73
      %s75 = sphi 0, %s73
      %s76 = sphi 0, %s75
      %s90 = sphi 0, %s76
      %s94 = sphi 0, %s94
      %s96 = sphi 0, %s94
      %s97 = sphi 0, %s96
      %s111 = sphi 0, %s97
      %s115 = sphi 0, %s115
      %s117 = sphi 0, %s115
      %s118 = sphi 0, %s117
      %s132 = sphi 0, %s118
      %s138 = sphi 0, %s140
      %s141 = sphi 0, %s138
      %s142 = sphi 0, %s141
      %s158 = sphi 0, %s142
    $region4: #{tpu_custom_call.1} parent=1 // loop_header_branch
      %21 = sbr.rel (%p19) target = $region8
    $region5: #{tpu_custom_call.1} parent=1 // loop_body
      %s23 = ssub.s32 %s18, 1
      %s24 = ssub.s32 %s18, 2
      %s25 = sadd.s32 %s18, 1
      %s26 = ssub.s32 %s18, %s25
      %p27 = scmp.eq.s32.totalorder %s26, 0
      %s29 = sadd.s32 %s28, 1
      %s30 = scalar_select %p27, %s28, %s29
      %p33 = pneg %p27
      %p34 = scmp.eq.s32.totalorder %s18, 1
      %p35 = por %p33, %p34
      %p36 = scmp.ne.s32.totalorder %s28, %s31
      %p37 = scmp.eq.s32.totalorder %s18, 0
      %p38 = por %p36, %p37
      %p39 = scmp.ne.s32.totalorder %s28, %s31
      %p40 = scmp.eq.s32.totalorder %s23, 1
      %p41 = por %p39, %p40
      %p42 = scmp.ne.s32.totalorder %s31, %s32
      %p43 = scmp.eq.s32.totalorder %s23, 0
      %p44 = por %p42, %p43
      %p45 = scmp.ne.s32.totalorder %s31, %s32
      %p46 = scmp.eq.s32.totalorder %s24, 1
      %p47 = por %p45, %p46
      %p49 = scmp.ne.s32.totalorder %s32, %s48
      %p50 = scmp.eq.s32.totalorder %s24, 0
      %p51 = por %p49, %p50
      %s53 = sadd.s32 %s52, 1
      %p56 = scmp.eq.s32.totalorder %s18, 1
      %p57 = scmp.ne.s32.totalorder %s52, %s54
      %p58 = scmp.eq.s32.totalorder %s18, 0
      %p59 = por %p57, %p58
      %p60 = scmp.ne.s32.totalorder %s52, %s54
      %p61 = scmp.eq.s32.totalorder %s23, 1
      %p62 = por %p60, %p61
      %p63 = scmp.ne.s32.totalorder %s54, %s55
      %p64 = scmp.eq.s32.totalorder %s23, 0
      %p65 = por %p63, %p64
      %p66 = scmp.ne.s32.totalorder %s54, %s55
      %p67 = scmp.eq.s32.totalorder %s24, 1
      %p68 = por %p66, %p67
      %p70 = scmp.ne.s32.totalorder %s55, %s69
      %p71 = scmp.eq.s32.totalorder %s24, 0
      %p72 = por %p70, %p71
      %s74 = sadd.s32 %s73, 1
      %p77 = scmp.eq.s32.totalorder %s18, 1
      %p78 = scmp.ne.s32.totalorder %s73, %s75
      %p79 = scmp.eq.s32.totalorder %s18, 0
      %p80 = por %p78, %p79
      %p81 = scmp.ne.s32.totalorder %s73, %s75
      %p82 = scmp.eq.s32.totalorder %s23, 1
      %p83 = por %p81, %p82
      %p84 = scmp.ne.s32.totalorder %s75, %s76
      %p85 = scmp.eq.s32.totalorder %s23, 0
      %p86 = por %p84, %p85
      %p87 = scmp.ne.s32.totalorder %s75, %s76
      %p88 = scmp.eq.s32.totalorder %s24, 1
      %p89 = por %p87, %p88
      %p91 = scmp.ne.s32.totalorder %s76, %s90
      %p92 = scmp.eq.s32.totalorder %s24, 0
      %p93 = por %p91, %p92
      %s95 = sadd.s32 %s94, 1
      %p98 = scmp.eq.s32.totalorder %s18, 1
      %p99 = scmp.ne.s32.totalorder %s94, %s96
      %p100 = scmp.eq.s32.totalorder %s18, 0
      %p101 = por %p99, %p100
      %p102 = scmp.ne.s32.totalorder %s94, %s96
      %p103 = scmp.eq.s32.totalorder %s23, 1
      %p104 = por %p102, %p103
      %p105 = scmp.ne.s32.totalorder %s96, %s97
      %p106 = scmp.eq.s32.totalorder %s23, 0
      %p107 = por %p105, %p106
      %p108 = scmp.ne.s32.totalorder %s96, %s97
      %p109 = scmp.eq.s32.totalorder %s24, 1
      %p110 = por %p108, %p109
      %p112 = scmp.ne.s32.totalorder %s97, %s111
      %p113 = scmp.eq.s32.totalorder %s24, 0
      %p114 = por %p112, %p113
      %s116 = sadd.s32 %s115, 1
      %p119 = scmp.eq.s32.totalorder %s18, 1
      %p120 = scmp.ne.s32.totalorder %s115, %s117
      %p121 = scmp.eq.s32.totalorder %s18, 0
      %p122 = por %p120, %p121
      %p123 = scmp.ne.s32.totalorder %s115, %s117
      %p124 = scmp.eq.s32.totalorder %s23, 1
      %p125 = por %p123, %p124
      %p126 = scmp.ne.s32.totalorder %s117, %s118
      %p127 = scmp.eq.s32.totalorder %s23, 0
      %p128 = por %p126, %p127
      %p129 = scmp.ne.s32.totalorder %s117, %s118
      %p130 = scmp.eq.s32.totalorder %s24, 1
      %p131 = por %p129, %p130
      %p133 = scmp.ne.s32.totalorder %s118, %s132
      %p134 = scmp.eq.s32.totalorder %s24, 0
      %p135 = por %p133, %p134
      %s136 = ssub.s32 %s18, %s25
      %p137 = scmp.eq.s32.totalorder %s136, 0
      %s139 = sadd.s32 %s138, 1
      %s140 = scalar_select %p137, %s138, %s139
      %p143 = pneg %p137
      %p144 = scmp.eq.s32.totalorder %s18, 1
      %p145 = por %p143, %p144
      %p146 = scmp.ne.s32.totalorder %s138, %s141
      %p147 = scmp.eq.s32.totalorder %s18, 0
      %p148 = por %p146, %p147
      %p149 = scmp.ne.s32.totalorder %s138, %s141
      %p150 = scmp.eq.s32.totalorder %s23, 1
      %p151 = por %p149, %p150
      %p152 = scmp.ne.s32.totalorder %s141, %s142
      %p153 = scmp.eq.s32.totalorder %s23, 0
      %p154 = por %p152, %p153
      %p155 = scmp.ne.s32.totalorder %s141, %s142
      %p156 = scmp.eq.s32.totalorder %s24, 1
      %p157 = por %p155, %p156
      %p159 = scmp.ne.s32.totalorder %s142, %s158
      %p160 = scmp.eq.s32.totalorder %s24, 0
      %p161 = por %p159, %p160
      %p162 = scmp.le.s32.totalorder 1, %s18
      %p163 = scmp.lt.s32.totalorder %s18, 3
      %p164 = pnand %p162, %p163
      %p165 = pneg %p164
      // Predicated region
      $region9: #{tpu_custom_call.1} parent=5 // pred_check
        _
      $region10: #{tpu_custom_call.1} parent=5 // pred_check_branch
        %167 = sbr.rel (%p164) target = $region12
      $region11: #{tpu_custom_call.1} parent=5 // pred_region
        %s168 = ssub.s32 %s18, 1
        // Predicated region
        $region13: #{tpu_custom_call.1} parent=11 // pred_check
          %p169 = pneg %p65
        $region14: #{tpu_custom_call.1} parent=11 // pred_check_branch
          %171 = sbr.rel (%p169) target = $region16
        $region15: #{tpu_custom_call.1} parent=11 // pred_region
          _
        $region16: #{tpu_custom_call.1} parent=11 // pred_fallthru
          _
        // Predicated region
        $region17: #{tpu_custom_call.1} parent=11 // pred_check
          %p172 = pneg %p86
        $region18: #{tpu_custom_call.1} parent=11 // pred_check_branch
          %174 = sbr.rel (%p172) target = $region20
        $region19: #{tpu_custom_call.1} parent=11 // pred_region
          _
        $region20: #{tpu_custom_call.1} parent=11 // pred_fallthru
          _
        // Predicated region
        $region21: #{tpu_custom_call.1} parent=11 // pred_check
          %p175 = pneg %p107
        $region22: #{tpu_custom_call.1} parent=11 // pred_check_branch
          %177 = sbr.rel (%p175) target = $region24
        $region23: #{tpu_custom_call.1} parent=11 // pred_region
          %s179 = ssub.s32 192, 192
          %180 = vsyncadd [#allocation6], %s179
          %s181 = sshll.u32 [#allocation5], 4
          %s182 = int_to_ptr.vmem [resolvable:$true] %s181
          %187 = dma.hbm_to_vmem [thread:$0]  %s3, 192, %s182, [#allocation6], 64, 64, 4
        $region24: #{tpu_custom_call.1} parent=11 // pred_fallthru
          _
        // Predicated region
        $region25: #{tpu_custom_call.1} parent=11 // pred_check
          %p188 = pneg %p128
        $region26: #{tpu_custom_call.1} parent=11 // pred_check_branch
          %190 = sbr.rel (%p188) target = $region28
        $region27: #{tpu_custom_call.1} parent=11 // pred_region
          _
        $region28: #{tpu_custom_call.1} parent=11 // pred_fallthru
          _
      $region12: #{tpu_custom_call.1} parent=5 // pred_fallthru
        _
      %p191 = scmp.lt.s32.totalorder %s18, 2
      // Predicated region
      $region29: #{tpu_custom_call.1} parent=5 // pred_check
        %p192 = pneg %p191
      $region30: #{tpu_custom_call.1} parent=5 // pred_check_branch
        %194 = sbr.rel (%p192) target = $region32
      $region31: #{tpu_custom_call.1} parent=5 // pred_region
        // Predicated region
        $region33: #{tpu_custom_call.1} parent=31 // pred_check
          %p195 = pneg %p38
        $region34: #{tpu_custom_call.1} parent=31 // pred_check_branch
          %197 = sbr.rel (%p195) target = $region36
        $region35: #{tpu_custom_call.1} parent=31 // pred_region
          #allocation9 [shape = 'u32[6]{0}', space=smem, size = 0x18, scoped, tag = 'DMA stride descriptor']
          %s198 = sand.u32 %s28, 1
          %s199 = scalar_lea.sflag [#allocation3], %s198
          %s200 = sand.u32 %s28, 1
          %s201 = smul.addr %s200, 192
          %s202 = scalar_lea.vmem [#allocation2], %s201
          %s203 = smul.u32 8, %s18
          %s205 = ssub.s32 3072, 3072
          %206 = vsyncadd %s199, %s205
          %s207 = smul.addr %s203, 2
          %s208 = smul.addr %s207, 64
          %s209 = scalar_lea.hbm %s0, %s208
          %s211 = sshll.u32 1, 14
          %s212 = sxor.u32 4294967295, %s211
          %s214 = sld [smem:[#allocation0]]
          %s215 = sadd.s32 2, %s214
          %s217 = sshll.u32 7, 26
          %s218 = sxor.u32 4294967295, %s217
          %s219 = sand.u32 0, %s218
          %s220 = sshll.u32 %s215, 26
          %s221 = sor.u32 %s219, %s220
          %s222 = sshll.u32 %s202, 4
          %s223 = int_to_ptr.vmem [resolvable:$true] %s222
          %229 = sst [smem:[#allocation9]] 2048
          %s230 = scalar_lea.smem [#allocation9], 1
          %231 = sst [smem:[%s230]] 1024
          %s232 = scalar_lea.smem [#allocation9], 2
          %233 = sst [smem:[%s232]] 16
          %s234 = scalar_lea.smem [#allocation9], 3
          %235 = sst [smem:[%s234]] 64
          %s236 = scalar_lea.smem [#allocation9], 4
          %237 = sst [smem:[%s236]] 64
          %s238 = scalar_lea.smem [#allocation9], 5
          %239 = sst [smem:[%s238]] 4
          %241 = dma.general %s209, 3072, %s223, %s199, [#allocation8], [#allocation9], %s221, 0
        $region36: #{tpu_custom_call.1} parent=31 // pred_fallthru
          _
      $region32: #{tpu_custom_call.1} parent=5 // pred_fallthru
        _
      %p242 = scmp.le.s32.totalorder 1, %s18
      %p243 = scmp.lt.s32.totalorder %s18, 3
      %p244 = pnand %p242, %p243
      %p245 = pneg %p244
      // Predicated region
      $region37: #{tpu_custom_call.1} parent=5 // pred_check
        _
      $region38: #{tpu_custom_call.1} parent=5 // pred_check_branch
        %247 = sbr.rel (%p244) target = $region40
      $region39: #{tpu_custom_call.1} parent=5 // pred_region
        %s248 = ssub.s32 %s18, 1
        %s249 = sand.u32 %s31, 1
        %s250 = scalar_lea.sflag [#allocation3], %s249
        %s251 = sand.u32 %s31, 1
        %s252 = smul.addr %s251, 192
        %s253 = scalar_lea.vmem [#allocation2], %s252
        // Predicated region
        $region41: #{tpu_custom_call.1} parent=39 // pred_check
          %p254 = pneg %p44
        $region42: #{tpu_custom_call.1} parent=39 // pred_check_branch
          %256 = sbr.rel (%p254) target = $region44
        $region43: #{tpu_custom_call.1} parent=39 // pred_region
          %257 = dma.done %s250, 3072
        $region44: #{tpu_custom_call.1} parent=39 // pred_fallthru
          _
        // Predicated region
        $region45: #{tpu_custom_call.1} parent=39 // pred_check
          %p258 = pneg %p107
        $region46: #{tpu_custom_call.1} parent=39 // pred_check_branch
          %260 = sbr.rel (%p258) target = $region48
        $region47: #{tpu_custom_call.1} parent=39 // pred_region
          %261 = dma.done [#allocation6], 192
        $region48: #{tpu_custom_call.1} parent=39 // pred_fallthru
          _
        %s262 = sand.u32 %s31, 1
        %s263 = scalar_lea.sflag [#allocation3], %s262
        %s264 = sand.u32 %s31, 1
        %s265 = smul.addr %s264, 192
        %s266 = scalar_lea.vmem [#allocation2], %s265
        %p267 = pneg %p44
        %p268 = pneg %p41
        %p269 = pneg %p65
        %p270 = pneg %p62
        %p271 = pneg %p86
        %p272 = pneg %p83
        %p273 = pneg %p107
        %p274 = pneg %p104
        %p275 = pneg %p128
        %p276 = pneg %p125
        %p277 = pneg %p154
        %p278 = pneg %p151
        %s279 = sand.u32 %s141, 1
        %s280 = scalar_lea.sflag [#allocation4], %s279
        %s281 = sand.u32 %s141, 1
        %s282 = smul.addr %s281, 8
        %s283 = scalar_lea.vmem [#allocation7], %s282
        %s284 = smul.u32 8, %s23
        loop: start=0, step=1, limit=3
        $region49: #{tpu_custom_call.1} parent=39 // loop_pre_header
          _
        $region50: #{tpu_custom_call.1} parent=39 // loop_header
          %s287 = sphi 0, %s291
          %p288 = scmp.ge.s32.totalorder %s287, 3
          %v292 = vphi 0.0, %v1012
          %v293 = vphi 0.0, %v1013
          %v294 = vphi 0.0, %v1014
          %v295 = vphi 0.0, %v1015
          %v296 = vphi 0.0, %v1016
          %v297 = vphi 0.0, %v1017
          %v298 = vphi 0.0, %v1018
          %v299 = vphi 0.0, %v1019
        $region51: #{tpu_custom_call.1} parent=39 // loop_header_branch
          %290 = sbr.rel (%p288) target = $region55
        $region52: #{tpu_custom_call.1} parent=39 // loop_body
          %s300 = smul.u32 %s287, 16
          %s301 = smul.addr %s300, 4
          %s302 = scalar_lea.vmem %s253, %s301 [#allocation2]
          %v303 = vld [vmem:[%s302] sm:$0xf]
          %v304 = vld [vmem:[%s302 + $0x4] sm:$0xf]
          %v305 = vld [vmem:[%s302 + $0x8] sm:$0xf]
          %v306 = vld [vmem:[%s302 + $0xc] sm:$0xf]
          %v307 = vld [vmem:[%s302 + $0x10] sm:$0xf]
          %v308 = vld [vmem:[%s302 + $0x14] sm:$0xf]
          %v309 = vld [vmem:[%s302 + $0x18] sm:$0xf]
          %v310 = vld [vmem:[%s302 + $0x1c] sm:$0xf]
          %v311 = vld [vmem:[%s302 + $0x20] sm:$0xf]
          %v312 = vld [vmem:[%s302 + $0x24] sm:$0xf]
          %v313 = vld [vmem:[%s302 + $0x28] sm:$0xf]
          %v314 = vld [vmem:[%s302 + $0x2c] sm:$0xf]
          %v315 = vld [vmem:[%s302 + $0x30] sm:$0xf]
          %v316 = vld [vmem:[%s302 + $0x34] sm:$0xf]
          %v317 = vld [vmem:[%s302 + $0x38] sm:$0xf]
          %v318 = vld [vmem:[%s302 + $0x3c] sm:$0xf]
          %v319 = vld [vmem:[%s1] sm:$0xf]
          %v320 = vld [vmem:[%s1 + $0x4] sm:$0xf]
          %v337 = vunpack.c.l.b16 %v303
          %v338 = vunpack.c.l.b16 %v304
          %v339 = vunpack.c.l.b16 %v305
          %v340 = vunpack.c.l.b16 %v306
          %v341 = vunpack.c.l.b16 %v307
          %v342 = vunpack.c.l.b16 %v308
          %v343 = vunpack.c.l.b16 %v309
          %v344 = vunpack.c.l.b16 %v310
          %v345 = vunpack.c.l.b16 %v311
          %v346 = vunpack.c.l.b16 %v312
          %v347 = vunpack.c.l.b16 %v313
          %v348 = vunpack.c.l.b16 %v314
          %v349 = vunpack.c.l.b16 %v315
          %v350 = vunpack.c.l.b16 %v316
          %v351 = vunpack.c.l.b16 %v317
          %v352 = vunpack.c.l.b16 %v318
          %v353 = vpack.c.b16 %v338, %v337
          %v354 = vpack.c.b16 %v340, %v339
          %v355 = vpack.c.b16 %v342, %v341
          %v356 = vpack.c.b16 %v344, %v343
          %v357 = vpack.c.b16 %v346, %v345
          %v358 = vpack.c.b16 %v348, %v347
          %v359 = vpack.c.b16 %v350, %v349
          %v360 = vpack.c.b16 %v352, %v351
          %v363 = vunpack.c.l.b16 %v319
          %v364 = vunpack.c.l.b16 %v320
          %v365 = vpack.c.b16 %v364, %v363
          %vm367 = vcmask 130048
          %v369 = vsel %vm367, %v353, 0
          %v372 = vsel %vm367, %v354, 0
          %v375 = vsel %vm367, %v355, 0
          %v378 = vsel %vm367, %v356, 0
          %v381 = vsel %vm367, %v357, 0
          %v384 = vsel %vm367, %v358, 0
          %v387 = vsel %vm367, %v359, 0
          %v390 = vsel %vm367, %v360, 0
          %392 = vmatprep.subr.bf16.mxu0 0
          %393 = vmatpush1.bf16.msra.mxu0 %v365
          %394 = vmatprep.subr.bf16.mxu0 0
          %395 = vmatpush1.bf16.msra.mxu0 0
          %396 = vmatprep.subr.bf16.mxu0 0
          %397 = vmatpush1.bf16.msra.mxu0 0
          %398 = vmatprep.subr.bf16.mxu0 0
          %399 = vmatpush1.bf16.msra.mxu0 0
          %400 = vmatprep.subr.bf16.mxu0 0
          %401 = vmatpush1.bf16.msra.mxu0 0
          %402 = vmatprep.subr.bf16.mxu0 0
          %403 = vmatpush1.bf16.msra.mxu0 0
          %404 = vmatprep.subr.bf16.mxu0 0
          %405 = vmatpush1.bf16.msra.mxu0 0
          %406 = vmatprep.subr.bf16.mxu0 0
          %407 = vmatpush1.bf16.msra.mxu0 0
          %408 = vmatprep.subr.bf16.mxu0 0
          %409 = vmatpush1.bf16.msra.mxu0 0
          %410 = vmatprep.subr.bf16.mxu0 0
          %411 = vmatpush1.bf16.msra.mxu0 0
          %412 = vmatprep.subr.bf16.mxu0 0
          %413 = vmatpush1.bf16.msra.mxu0 0
          %414 = vmatprep.subr.bf16.mxu0 0
          %415 = vmatpush1.bf16.msra.mxu0 0
          %416 = vmatprep.subr.bf16.mxu0 0
          %417 = vmatpush1.bf16.msra.mxu0 0
          %418 = vmatprep.subr.bf16.mxu0 0
          %419 = vmatpush1.bf16.msra.mxu0 0
          %420 = vmatprep.subr.bf16.mxu0 0
          %421 = vmatpush1.bf16.msra.mxu0 0
          %422 = vmatprep.subr.bf16.mxu0 0
          %423 = vmatpush1.bf16.msra.mxu0 0
          %424 = vmatprep.mubr.bf16.mxu0 0
          %425 = vmatmul.mubr.bf16.gmra.mrb[0].mxu0 %v369
          %v426 = vpop.f32.mrb[0].mxu0
          %v427 = vadd.f32 0.0, %v426
          %v428 = vpop.f32.mrb[0].mxu0
          %v429 = vpop.f32.mrb[0].mxu0
          %v430 = vadd.f32 0.0, %v429
          %v431 = vpop.f32.mrb[0].mxu0
          %432 = vmatprep.mubr.bf16.mxu0 0
          %433 = vmatmul.mubr.bf16.gmra.mrb[0].mxu0 %v372
          %v434 = vpop.f32.mrb[0].mxu0
          %v435 = vadd.f32 0.0, %v434
          %v436 = vpop.f32.mrb[0].mxu0
          %v437 = vpop.f32.mrb[0].mxu0
          %v438 = vadd.f32 0.0, %v437
          %v439 = vpop.f32.mrb[0].mxu0
          %440 = vmatprep.mubr.bf16.mxu0 0
          %441 = vmatmul.mubr.bf16.gmra.mrb[0].mxu0 %v375
          %v442 = vpop.f32.mrb[0].mxu0
          %v443 = vadd.f32 0.0, %v442
          %v444 = vpop.f32.mrb[0].mxu0
          %v445 = vpop.f32.mrb[0].mxu0
          %v446 = vadd.f32 0.0, %v445
          %v447 = vpop.f32.mrb[0].mxu0
          %448 = vmatprep.mubr.bf16.mxu0 0
          %449 = vmatmul.mubr.bf16.gmra.mrb[0].mxu0 %v378
          %v450 = vpop.f32.mrb[0].mxu0
          %v451 = vadd.f32 0.0, %v450
          %v452 = vpop.f32.mrb[0].mxu0
          %v453 = vpop.f32.mrb[0].mxu0
          %v454 = vadd.f32 0.0, %v453
          %v455 = vpop.f32.mrb[0].mxu0
          %456 = vmatprep.mubr.bf16.mxu0 0
          %457 = vmatmul.mubr.bf16.gmra.mrb[0].mxu0 %v381
          %v458 = vpop.f32.mrb[0].mxu0
          %v459 = vadd.f32 0.0, %v458
          %v460 = vpop.f32.mrb[0].mxu0
          %v461 = vpop.f32.mrb[0].mxu0
          %v462 = vadd.f32 0.0, %v461
          %v463 = vpop.f32.mrb[0].mxu0
          %464 = vmatprep.mubr.bf16.mxu0 0
          %465 = vmatmul.mubr.bf16.gmra.mrb[0].mxu0 %v384
          %v466 = vpop.f32.mrb[0].mxu0
          %v467 = vadd.f32 0.0, %v466
          %v468 = vpop.f32.mrb[0].mxu0
          %v469 = vpop.f32.mrb[0].mxu0
          %v470 = vadd.f32 0.0, %v469
          %v471 = vpop.f32.mrb[0].mxu0
          %472 = vmatprep.mubr.bf16.mxu0 0
          %473 = vmatmul.mubr.bf16.gmra.mrb[0].mxu0 %v387
          %v474 = vpop.f32.mrb[0].mxu0
          %v475 = vadd.f32 0.0, %v474
          %v476 = vpop.f32.mrb[0].mxu0
          %v477 = vpop.f32.mrb[0].mxu0
          %v478 = vadd.f32 0.0, %v477
          %v479 = vpop.f32.mrb[0].mxu0
          %480 = vmatprep.mubr.bf16.mxu0 0
          %481 = vmatmul.mubr.bf16.gmra.mrb[0].mxu0 %v390
          %v482 = vpop.f32.mrb[0].mxu0
          %v483 = vadd.f32 0.0, %v482
          %v484 = vpop.f32.mrb[0].mxu0
          %v485 = vpop.f32.mrb[0].mxu0
          %v486 = vadd.f32 0.0, %v485
          %v487 = vpop.f32.mrb[0].mxu0
          %488 = vdwg.mxu0
          %489 = vxpose.xlu0.b32.start [1/16] %v427, 128
          %490 = vxpose.xlu0.b32.cont [2/16] %v430, 128
          %491 = vxpose.xlu0.b32.cont [3/16] 0.0, 128
          %492 = vxpose.xlu0.b32.cont [4/16] 0.0, 128
          %493 = vxpose.xlu0.b32.cont [5/16] 0.0, 128
          %494 = vxpose.xlu0.b32.cont [6/16] 0.0, 128
          %495 = vxpose.xlu0.b32.cont [7/16] 0.0, 128
          %496 = vxpose.xlu0.b32.cont [8/16] 0.0, 128
          %497 = vxpose.xlu0.b32.cont [9/16] 0.0, 128
          %498 = vxpose.xlu0.b32.cont [10/16] 0.0, 128
          %499 = vxpose.xlu0.b32.cont [11/16] 0.0, 128
          %500 = vxpose.xlu0.b32.cont [12/16] 0.0, 128
          %501 = vxpose.xlu0.b32.cont [13/16] 0.0, 128
          %502 = vxpose.xlu0.b32.cont [14/16] 0.0, 128
          %503 = vxpose.xlu0.b32.cont [15/16] 0.0, 128
          %504 = vxpose.xlu0.b32.end [16/16] 0.0, 128
          %v505 = vpop.trf.xlu0
          %v506 = vpop.trf.xlu0
          %v507 = vpop.trf.xlu0
          %v508 = vpop.trf.xlu0
          %v509 = vpop.trf.xlu0
          %v510 = vpop.trf.xlu0
          %v511 = vpop.trf.xlu0
          %v512 = vpop.trf.xlu0
          %v513 = vpop.trf.xlu0
          %v514 = vpop.trf.xlu0
          %v515 = vpop.trf.xlu0
          %v516 = vpop.trf.xlu0
          %v517 = vpop.trf.xlu0
          %v518 = vpop.trf.xlu0
          %v519 = vpop.trf.xlu0
          %v520 = vpop.trf.xlu0
          %521 = vxpose.xlu0.b32.start [1/16] %v435, 128
          %522 = vxpose.xlu0.b32.cont [2/16] %v438, 128
          %523 = vxpose.xlu0.b32.cont [3/16] 0.0, 128
          %524 = vxpose.xlu0.b32.cont [4/16] 0.0, 128
          %525 = vxpose.xlu0.b32.cont [5/16] 0.0, 128
          %526 = vxpose.xlu0.b32.cont [6/16] 0.0, 128
          %527 = vxpose.xlu0.b32.cont [7/16] 0.0, 128
          %528 = vxpose.xlu0.b32.cont [8/16] 0.0, 128
          %529 = vxpose.xlu0.b32.cont [9/16] 0.0, 128
          %530 = vxpose.xlu0.b32.cont [10/16] 0.0, 128
          %531 = vxpose.xlu0.b32.cont [11/16] 0.0, 128
          %532 = vxpose.xlu0.b32.cont [12/16] 0.0, 128
          %533 = vxpose.xlu0.b32.cont [13/16] 0.0, 128
          %534 = vxpose.xlu0.b32.cont [14/16] 0.0, 128
          %535 = vxpose.xlu0.b32.cont [15/16] 0.0, 128
          %536 = vxpose.xlu0.b32.end [16/16] 0.0, 128
          %v537 = vpop.trf.xlu0
          %v538 = vpop.trf.xlu0
          %v539 = vpop.trf.xlu0
          %v540 = vpop.trf.xlu0
          %v541 = vpop.trf.xlu0
          %v542 = vpop.trf.xlu0
          %v543 = vpop.trf.xlu0
          %v544 = vpop.trf.xlu0
          %v545 = vpop.trf.xlu0
          %v546 = vpop.trf.xlu0
          %v547 = vpop.trf.xlu0
          %v548 = vpop.trf.xlu0
          %v549 = vpop.trf.xlu0
          %v550 = vpop.trf.xlu0
          %v551 = vpop.trf.xlu0
          %v552 = vpop.trf.xlu0
          %553 = vxpose.xlu0.b32.start [1/16] %v443, 128
          %554 = vxpose.xlu0.b32.cont [2/16] %v446, 128
          %555 = vxpose.xlu0.b32.cont [3/16] 0.0, 128
          %556 = vxpose.xlu0.b32.cont [4/16] 0.0, 128
          %557 = vxpose.xlu0.b32.cont [5/16] 0.0, 128
          %558 = vxpose.xlu0.b32.cont [6/16] 0.0, 128
          %559 = vxpose.xlu0.b32.cont [7/16] 0.0, 128
          %560 = vxpose.xlu0.b32.cont [8/16] 0.0, 128
          %561 = vxpose.xlu0.b32.cont [9/16] 0.0, 128
          %562 = vxpose.xlu0.b32.cont [10/16] 0.0, 128
          %563 = vxpose.xlu0.b32.cont [11/16] 0.0, 128
          %564 = vxpose.xlu0.b32.cont [12/16] 0.0, 128
          %565 = vxpose.xlu0.b32.cont [13/16] 0.0, 128
          %566 = vxpose.xlu0.b32.cont [14/16] 0.0, 128
          %567 = vxpose.xlu0.b32.cont [15/16] 0.0, 128
          %568 = vxpose.xlu0.b32.end [16/16] 0.0, 128
          %v569 = vpop.trf.xlu0
          %v570 = vpop.trf.xlu0
          %v571 = vpop.trf.xlu0
          %v572 = vpop.trf.xlu0
          %v573 = vpop.trf.xlu0
          %v574 = vpop.trf.xlu0
          %v575 = vpop.trf.xlu0
          %v576 = vpop.trf.xlu0
          %v577 = vpop.trf.xlu0
          %v578 = vpop.trf.xlu0
          %v579 = vpop.trf.xlu0
          %v580 = vpop.trf.xlu0
          %v581 = vpop.trf.xlu0
          %v582 = vpop.trf.xlu0
          %v583 = vpop.trf.xlu0
          %v584 = vpop.trf.xlu0
          %585 = vxpose.xlu0.b32.start [1/16] %v451, 128
          %586 = vxpose.xlu0.b32.cont [2/16] %v454, 128
          %587 = vxpose.xlu0.b32.cont [3/16] 0.0, 128
          %588 = vxpose.xlu0.b32.cont [4/16] 0.0, 128
          %589 = vxpose.xlu0.b32.cont [5/16] 0.0, 128
          %590 = vxpose.xlu0.b32.cont [6/16] 0.0, 128
          %591 = vxpose.xlu0.b32.cont [7/16] 0.0, 128
          %592 = vxpose.xlu0.b32.cont [8/16] 0.0, 128
          %593 = vxpose.xlu0.b32.cont [9/16] 0.0, 128
          %594 = vxpose.xlu0.b32.cont [10/16] 0.0, 128
          %595 = vxpose.xlu0.b32.cont [11/16] 0.0, 128
          %596 = vxpose.xlu0.b32.cont [12/16] 0.0, 128
          %597 = vxpose.xlu0.b32.cont [13/16] 0.0, 128
          %598 = vxpose.xlu0.b32.cont [14/16] 0.0, 128
          %599 = vxpose.xlu0.b32.cont [15/16] 0.0, 128
          %600 = vxpose.xlu0.b32.end [16/16] 0.0, 128
          %v601 = vpop.trf.xlu0
          %v602 = vpop.trf.xlu0
          %v603 = vpop.trf.xlu0
          %v604 = vpop.trf.xlu0
          %v605 = vpop.trf.xlu0
          %v606 = vpop.trf.xlu0
          %v607 = vpop.trf.xlu0
          %v608 = vpop.trf.xlu0
          %v609 = vpop.trf.xlu0
          %v610 = vpop.trf.xlu0
          %v611 = vpop.trf.xlu0
          %v612 = vpop.trf.xlu0
          %v613 = vpop.trf.xlu0
          %v614 = vpop.trf.xlu0
          %v615 = vpop.trf.xlu0
          %v616 = vpop.trf.xlu0
          %617 = vxpose.xlu0.b32.start [1/16] %v459, 128
          %618 = vxpose.xlu0.b32.cont [2/16] %v462, 128
          %619 = vxpose.xlu0.b32.cont [3/16] 0.0, 128
          %620 = vxpose.xlu0.b32.cont [4/16] 0.0, 128
          %621 = vxpose.xlu0.b32.cont [5/16] 0.0, 128
          %622 = vxpose.xlu0.b32.cont [6/16] 0.0, 128
          %623 = vxpose.xlu0.b32.cont [7/16] 0.0, 128
          %624 = vxpose.xlu0.b32.cont [8/16] 0.0, 128
          %625 = vxpose.xlu0.b32.cont [9/16] 0.0, 128
          %626 = vxpose.xlu0.b32.cont [10/16] 0.0, 128
          %627 = vxpose.xlu0.b32.cont [11/16] 0.0, 128
          %628 = vxpose.xlu0.b32.cont [12/16] 0.0, 128
          %629 = vxpose.xlu0.b32.cont [13/16] 0.0, 128
          %630 = vxpose.xlu0.b32.cont [14/16] 0.0, 128
          %631 = vxpose.xlu0.b32.cont [15/16] 0.0, 128
          %632 = vxpose.xlu0.b32.end [16/16] 0.0, 128
          %v633 = vpop.trf.xlu0
          %v634 = vpop.trf.xlu0
          %v635 = vpop.trf.xlu0
          %v636 = vpop.trf.xlu0
          %v637 = vpop.trf.xlu0
          %v638 = vpop.trf.xlu0
          %v639 = vpop.trf.xlu0
          %v640 = vpop.trf.xlu0
          %v641 = vpop.trf.xlu0
          %v642 = vpop.trf.xlu0
          %v643 = vpop.trf.xlu0
          %v644 = vpop.trf.xlu0
          %v645 = vpop.trf.xlu0
          %v646 = vpop.trf.xlu0
          %v647 = vpop.trf.xlu0
          %v648 = vpop.trf.xlu0
          %649 = vxpose.xlu0.b32.start [1/16] %v467, 128
          %650 = vxpose.xlu0.b32.cont [2/16] %v470, 128
          %651 = vxpose.xlu0.b32.cont [3/16] 0.0, 128
          %652 = vxpose.xlu0.b32.cont [4/16] 0.0, 128
          %653 = vxpose.xlu0.b32.cont [5/16] 0.0, 128
          %654 = vxpose.xlu0.b32.cont [6/16] 0.0, 128
          %655 = vxpose.xlu0.b32.cont [7/16] 0.0, 128
          %656 = vxpose.xlu0.b32.cont [8/16] 0.0, 128
          %657 = vxpose.xlu0.b32.cont [9/16] 0.0, 128
          %658 = vxpose.xlu0.b32.cont [10/16] 0.0, 128
          %659 = vxpose.xlu0.b32.cont [11/16] 0.0, 128
          %660 = vxpose.xlu0.b32.cont [12/16] 0.0, 128
          %661 = vxpose.xlu0.b32.cont [13/16] 0.0, 128
          %662 = vxpose.xlu0.b32.cont [14/16] 0.0, 128
          %663 = vxpose.xlu0.b32.cont [15/16] 0.0, 128
          %664 = vxpose.xlu0.b32.end [16/16] 0.0, 128
          %v665 = vpop.trf.xlu0
          %v666 = vpop.trf.xlu0
          %v667 = vpop.trf.xlu0
          %v668 = vpop.trf.xlu0
          %v669 = vpop.trf.xlu0
          %v670 = vpop.trf.xlu0
          %v671 = vpop.trf.xlu0
          %v672 = vpop.trf.xlu0
          %v673 = vpop.trf.xlu0
          %v674 = vpop.trf.xlu0
          %v675 = vpop.trf.xlu0
          %v676 = vpop.trf.xlu0
          %v677 = vpop.trf.xlu0
          %v678 = vpop.trf.xlu0
          %v679 = vpop.trf.xlu0
          %v680 = vpop.trf.xlu0
          %681 = vxpose.xlu0.b32.start [1/16] %v475, 128
          %682 = vxpose.xlu0.b32.cont [2/16] %v478, 128
          %683 = vxpose.xlu0.b32.cont [3/16] 0.0, 128
          %684 = vxpose.xlu0.b32.cont [4/16] 0.0, 128
          %685 = vxpose.xlu0.b32.cont [5/16] 0.0, 128
          %686 = vxpose.xlu0.b32.cont [6/16] 0.0, 128
          %687 = vxpose.xlu0.b32.cont [7/16] 0.0, 128
          %688 = vxpose.xlu0.b32.cont [8/16] 0.0, 128
          %689 = vxpose.xlu0.b32.cont [9/16] 0.0, 128
          %690 = vxpose.xlu0.b32.cont [10/16] 0.0, 128
          %691 = vxpose.xlu0.b32.cont [11/16] 0.0, 128
          %692 = vxpose.xlu0.b32.cont [12/16] 0.0, 128
          %693 = vxpose.xlu0.b32.cont [13/16] 0.0, 128
          %694 = vxpose.xlu0.b32.cont [14/16] 0.0, 128
          %695 = vxpose.xlu0.b32.cont [15/16] 0.0, 128
          %696 = vxpose.xlu0.b32.end [16/16] 0.0, 128
          %v697 = vpop.trf.xlu0
          %v698 = vpop.trf.xlu0
          %v699 = vpop.trf.xlu0
          %v700 = vpop.trf.xlu0
          %v701 = vpop.trf.xlu0
          %v702 = vpop.trf.xlu0
          %v703 = vpop.trf.xlu0
          %v704 = vpop.trf.xlu0
          %v705 = vpop.trf.xlu0
          %v706 = vpop.trf.xlu0
          %v707 = vpop.trf.xlu0
          %v708 = vpop.trf.xlu0
          %v709 = vpop.trf.xlu0
          %v710 = vpop.trf.xlu0
          %v711 = vpop.trf.xlu0
          %v712 = vpop.trf.xlu0
          %713 = vxpose.xlu0.b32.start [1/16] %v483, 128
          %714 = vxpose.xlu0.b32.cont [2/16] %v486, 128
          %715 = vxpose.xlu0.b32.cont [3/16] 0.0, 128
          %716 = vxpose.xlu0.b32.cont [4/16] 0.0, 128
          %717 = vxpose.xlu0.b32.cont [5/16] 0.0, 128
          %718 = vxpose.xlu0.b32.cont [6/16] 0.0, 128
          %719 = vxpose.xlu0.b32.cont [7/16] 0.0, 128
          %720 = vxpose.xlu0.b32.cont [8/16] 0.0, 128
          %721 = vxpose.xlu0.b32.cont [9/16] 0.0, 128
          %722 = vxpose.xlu0.b32.cont [10/16] 0.0, 128
          %723 = vxpose.xlu0.b32.cont [11/16] 0.0, 128
          %724 = vxpose.xlu0.b32.cont [12/16] 0.0, 128
          %725 = vxpose.xlu0.b32.cont [13/16] 0.0, 128
          %726 = vxpose.xlu0.b32.cont [14/16] 0.0, 128
          %727 = vxpose.xlu0.b32.cont [15/16] 0.0, 128
          %728 = vxpose.xlu0.b32.end [16/16] 0.0, 128
          %v729 = vpop.trf.xlu0
          %v730 = vpop.trf.xlu0
          %v731 = vpop.trf.xlu0
          %v732 = vpop.trf.xlu0
          %v733 = vpop.trf.xlu0
          %v734 = vpop.trf.xlu0
          %v735 = vpop.trf.xlu0
          %v736 = vpop.trf.xlu0
          %v737 = vpop.trf.xlu0
          %v738 = vpop.trf.xlu0
          %v739 = vpop.trf.xlu0
          %v740 = vpop.trf.xlu0
          %v741 = vpop.trf.xlu0
          %v742 = vpop.trf.xlu0
          %v743 = vpop.trf.xlu0
          %v744 = vpop.trf.xlu0
          %v745 = vpack.c.bf16 %v505, %v505
          %v746 = vpack.c.bf16 %v537, %v537
          %v747 = vpack.c.bf16 %v569, %v569
          %v748 = vpack.c.bf16 %v601, %v601
          %v749 = vpack.c.bf16 %v633, %v633
          %v750 = vpack.c.bf16 %v665, %v665
          %v751 = vpack.c.bf16 %v697, %v697
          %v752 = vpack.c.bf16 %v729, %v729
          %v753 = vld [vmem:[%s2] sm:$0xf]
          %v754 = vld [vmem:[%s2 + $0x4] sm:$0xf]
          %v763 = vunpack.c.l.b16 %v745
          %v764 = vunpack.c.l.b16 %v746
          %v765 = vunpack.c.l.b16 %v747
          %v766 = vunpack.c.l.b16 %v748
          %v767 = vunpack.c.l.b16 %v749
          %v768 = vunpack.c.l.b16 %v750
          %v769 = vunpack.c.l.b16 %v751
          %v770 = vunpack.c.l.b16 %v752
          %v771 = vpack.c.b16 %v764, %v763
          %v772 = vpack.c.b16 %v766, %v765
          %v773 = vpack.c.b16 %v768, %v767
          %v774 = vpack.c.b16 %v770, %v769
          %v777 = vunpack.c.l.b16 %v753
          %v778 = vunpack.c.l.b16 %v754
          %v779 = vpack.c.b16 %v778, %v777
          %v782 = vsel %vm367, %v771, 0
          %v785 = vsel %vm367, %v772, 0
          %v788 = vsel %vm367, %v773, 0
          %v791 = vsel %vm367, %v774, 0
          %793 = vmatprep.subr.bf16.mxu0 0
          %794 = vmatpush1.bf16.msra.mxu0 %v779
          %795 = vmatprep.subr.bf16.mxu0 0
          %796 = vmatpush1.bf16.msra.mxu0 0
          %797 = vmatprep.subr.bf16.mxu0 0
          %798 = vmatpush1.bf16.msra.mxu0 0
          %799 = vmatprep.subr.bf16.mxu0 0
          %800 = vmatpush1.bf16.msra.mxu0 0
          %801 = vmatprep.subr.bf16.mxu0 0
          %802 = vmatpush1.bf16.msra.mxu0 0
          %803 = vmatprep.subr.bf16.mxu0 0
          %804 = vmatpush1.bf16.msra.mxu0 0
          %805 = vmatprep.subr.bf16.mxu0 0
          %806 = vmatpush1.bf16.msra.mxu0 0
          %807 = vmatprep.subr.bf16.mxu0 0
          %808 = vmatpush1.bf16.msra.mxu0 0
          %809 = vmatprep.subr.bf16.mxu0 0
          %810 = vmatpush1.bf16.msra.mxu0 0
          %811 = vmatprep.subr.bf16.mxu0 0
          %812 = vmatpush1.bf16.msra.mxu0 0
          %813 = vmatprep.subr.bf16.mxu0 0
          %814 = vmatpush1.bf16.msra.mxu0 0
          %815 = vmatprep.subr.bf16.mxu0 0
          %816 = vmatpush1.bf16.msra.mxu0 0
          %817 = vmatprep.subr.bf16.mxu0 0
          %818 = vmatpush1.bf16.msra.mxu0 0
          %819 = vmatprep.subr.bf16.mxu0 0
          %820 = vmatpush1.bf16.msra.mxu0 0
          %821 = vmatprep.subr.bf16.mxu0 0
          %822 = vmatpush1.bf16.msra.mxu0 0
          %823 = vmatprep.subr.bf16.mxu0 0
          %824 = vmatpush1.bf16.msra.mxu0 0
          %825 = vmatprep.mubr.bf16.mxu0 0
          %826 = vmatmul.mubr.bf16.gmra.mrb[0].mxu0 %v782
          %v827 = vpop.f32.mrb[0].mxu0
          %v828 = vadd.f32 0.0, %v827
          %v829 = vpop.f32.mrb[0].mxu0
          %v830 = vpop.f32.mrb[0].mxu0
          %v831 = vadd.f32 0.0, %v830
          %v832 = vpop.f32.mrb[0].mxu0
          %833 = vmatprep.mubr.bf16.mxu0 0
          %834 = vmatmul.mubr.bf16.gmra.mrb[0].mxu0 %v785
          %v835 = vpop.f32.mrb[0].mxu0
          %v836 = vadd.f32 0.0, %v835
          %v837 = vpop.f32.mrb[0].mxu0
          %v838 = vpop.f32.mrb[0].mxu0
          %v839 = vadd.f32 0.0, %v838
          %v840 = vpop.f32.mrb[0].mxu0
          %841 = vmatprep.mubr.bf16.mxu0 0
          %842 = vmatmul.mubr.bf16.gmra.mrb[0].mxu0 %v788
          %v843 = vpop.f32.mrb[0].mxu0
          %v844 = vadd.f32 0.0, %v843
          %v845 = vpop.f32.mrb[0].mxu0
          %v846 = vpop.f32.mrb[0].mxu0
          %v847 = vadd.f32 0.0, %v846
          %v848 = vpop.f32.mrb[0].mxu0
          %849 = vmatprep.mubr.bf16.mxu0 0
          %850 = vmatmul.mubr.bf16.gmra.mrb[0].mxu0 %v791
          %v851 = vpop.f32.mrb[0].mxu0
          %v852 = vadd.f32 0.0, %v851
          %v853 = vpop.f32.mrb[0].mxu0
          %v854 = vpop.f32.mrb[0].mxu0
          %v855 = vadd.f32 0.0, %v854
          %v856 = vpop.f32.mrb[0].mxu0
          %857 = vdwg.mxu0
          %v858 = vpack.c.bf16 %v831, %v828
          %v859 = vpack.c.bf16 %v839, %v836
          %v860 = vpack.c.bf16 %v847, %v844
          %v861 = vpack.c.bf16 %v855, %v852
          %s862 = smul.addr %s287, 4
          %s863 = scalar_lea.vmem [#allocation5], %s862
          %v864 = vld [vmem:[%s863] sm:$0xf]
          %vm865 = vcmask 64512
          %v867 = vsel %vm865, %v858, 0
          %v870 = vsel %vm865, %v859, 0
          %v873 = vsel %vm865, %v860, 0
          %v876 = vsel %vm865, %v861, 0
          %vm878 = vcmask 1043456
          %v880 = vsel %vm878, %v864, 0
          %882 = vmatprep.subr.bf16.mxu0 0
          %883 = vmatpush1.bf16.msra.mxu0 %v880
          %884 = vmatprep.subr.bf16.mxu0 0
          %885 = vmatpush1.bf16.msra.mxu0 0
          %886 = vmatprep.subr.bf16.mxu0 0
          %887 = vmatpush1.bf16.msra.mxu0 0
          %888 = vmatprep.subr.bf16.mxu0 0
          %889 = vmatpush1.bf16.msra.mxu0 0
          %890 = vmatprep.subr.bf16.mxu0 0
          %891 = vmatpush1.bf16.msra.mxu0 0
          %892 = vmatprep.subr.bf16.mxu0 0
          %893 = vmatpush1.bf16.msra.mxu0 0
          %894 = vmatprep.subr.bf16.mxu0 0
          %895 = vmatpush1.bf16.msra.mxu0 0
          %896 = vmatprep.subr.bf16.mxu0 0
          %897 = vmatpush1.bf16.msra.mxu0 0
          %898 = vmatprep.subr.bf16.mxu0 0
          %899 = vmatpush1.bf16.msra.mxu0 0
          %900 = vmatprep.subr.bf16.mxu0 0
          %901 = vmatpush1.bf16.msra.mxu0 0
          %902 = vmatprep.subr.bf16.mxu0 0
          %903 = vmatpush1.bf16.msra.mxu0 0
          %904 = vmatprep.subr.bf16.mxu0 0
          %905 = vmatpush1.bf16.msra.mxu0 0
          %906 = vmatprep.subr.bf16.mxu0 0
          %907 = vmatpush1.bf16.msra.mxu0 0
          %908 = vmatprep.subr.bf16.mxu0 0
          %909 = vmatpush1.bf16.msra.mxu0 0
          %910 = vmatprep.subr.bf16.mxu0 0
          %911 = vmatpush1.bf16.msra.mxu0 0
          %912 = vmatprep.subr.bf16.mxu0 0
          %913 = vmatpush1.bf16.msra.mxu0 0
          %914 = vmatprep.mubr.bf16.mxu0 0
          %915 = vmatmul.mubr.bf16.gmra.mrb[0].mxu0 %v867
          %v916 = vpop.f32.mrb[0].mxu0
          %v917 = vadd.f32 0.0, %v916
          %v918 = vpop.f32.mrb[0].mxu0
          %v919 = vpop.f32.mrb[0].mxu0
          %v920 = vadd.f32 0.0, %v919
          %v921 = vpop.f32.mrb[0].mxu0
          %922 = vmatprep.mubr.bf16.mxu0 0
          %923 = vmatmul.mubr.bf16.gmra.mrb[0].mxu0 %v870
          %v924 = vpop.f32.mrb[0].mxu0
          %v925 = vadd.f32 0.0, %v924
          %v926 = vpop.f32.mrb[0].mxu0
          %v927 = vpop.f32.mrb[0].mxu0
          %v928 = vadd.f32 0.0, %v927
          %v929 = vpop.f32.mrb[0].mxu0
          %930 = vmatprep.mubr.bf16.mxu0 0
          %931 = vmatmul.mubr.bf16.gmra.mrb[0].mxu0 %v873
          %v932 = vpop.f32.mrb[0].mxu0
          %v933 = vadd.f32 0.0, %v932
          %v934 = vpop.f32.mrb[0].mxu0
          %v935 = vpop.f32.mrb[0].mxu0
          %v936 = vadd.f32 0.0, %v935
          %v937 = vpop.f32.mrb[0].mxu0
          %938 = vmatprep.mubr.bf16.mxu0 0
          %939 = vmatmul.mubr.bf16.gmra.mrb[0].mxu0 %v876
          %v940 = vpop.f32.mrb[0].mxu0
          %v941 = vadd.f32 0.0, %v940
          %v942 = vpop.f32.mrb[0].mxu0
          %v943 = vpop.f32.mrb[0].mxu0
          %v944 = vadd.f32 0.0, %v943
          %v945 = vpop.f32.mrb[0].mxu0
          %946 = vdwg.mxu0
          %v947 = vmax.f32 %v917, 0.0
          %v948 = vmax.f32 %v920, 0.0
          %v949 = vmax.f32 %v925, 0.0
          %v950 = vmax.f32 %v928, 0.0
          %v951 = vmax.f32 %v933, 0.0
          %v952 = vmax.f32 %v936, 0.0
          %v953 = vmax.f32 %v941, 0.0
          %v954 = vmax.f32 %v944, 0.0
          %vm955 = vcmask 523264
          %v956 = vsel %vm955, %v947, 0.0
          %v957 = vrot.slane %v956, 4
          %v958 = vadd.f32 %v956, %v957
          %v959 = vrot.slane %v958, 2
          %v960 = vadd.f32 %v958, %v959
          %v961 = vrot.slane %v960, 1
          %v962 = vadd.f32 %v960, %v961
          %v963 = vsel %vm955, %v948, 0.0
          %v964 = vrot.slane %v963, 4
          %v965 = vadd.f32 %v963, %v964
          %v966 = vrot.slane %v965, 2
          %v967 = vadd.f32 %v965, %v966
          %v968 = vrot.slane %v967, 1
          %v969 = vadd.f32 %v967, %v968
          %v970 = vsel %vm955, %v949, 0.0
          %v971 = vrot.slane %v970, 4
          %v972 = vadd.f32 %v970, %v971
          %v973 = vrot.slane %v972, 2
          %v974 = vadd.f32 %v972, %v973
          %v975 = vrot.slane %v974, 1
          %v976 = vadd.f32 %v974, %v975
          %v977 = vsel %vm955, %v950, 0.0
          %v978 = vrot.slane %v977, 4
          %v979 = vadd.f32 %v977, %v978
          %v980 = vrot.slane %v979, 2
          %v981 = vadd.f32 %v979, %v980
          %v982 = vrot.slane %v981, 1
          %v983 = vadd.f32 %v981, %v982
          %v984 = vsel %vm955, %v951, 0.0
          %v985 = vrot.slane %v984, 4
          %v986 = vadd.f32 %v984, %v985
          %v987 = vrot.slane %v986, 2
          %v988 = vadd.f32 %v986, %v987
          %v989 = vrot.slane %v988, 1
          %v990 = vadd.f32 %v988, %v989
          %v991 = vsel %vm955, %v952, 0.0
          %v992 = vrot.slane %v991, 4
          %v993 = vadd.f32 %v991, %v992
          %v994 = vrot.slane %v993, 2
          %v995 = vadd.f32 %v993, %v994
          %v996 = vrot.slane %v995, 1
          %v997 = vadd.f32 %v995, %v996
          %v998 = vsel %vm955, %v953, 0.0
          %v999 = vrot.slane %v998, 4
          %v1000 = vadd.f32 %v998, %v999
          %v1001 = vrot.slane %v1000, 2
          %v1002 = vadd.f32 %v1000, %v1001
          %v1003 = vrot.slane %v1002, 1
          %v1004 = vadd.f32 %v1002, %v1003
          %v1005 = vsel %vm955, %v954, 0.0
          %v1006 = vrot.slane %v1005, 4
          %v1007 = vadd.f32 %v1005, %v1006
          %v1008 = vrot.slane %v1007, 2
          %v1009 = vadd.f32 %v1007, %v1008
          %v1010 = vrot.slane %v1009, 1
          %v1011 = vadd.f32 %v1009, %v1010
          %v1012 = vadd.f32 %v292, %v962
          %v1013 = vadd.f32 %v293, %v969
          %v1014 = vadd.f32 %v294, %v976
          %v1015 = vadd.f32 %v295, %v983
          %v1016 = vadd.f32 %v296, %v990
          %v1017 = vadd.f32 %v297, %v997
          %v1018 = vadd.f32 %v298, %v1004
          %v1019 = vadd.f32 %v299, %v1011
        $region53: #{tpu_custom_call.1} parent=39 // loop_footer
          %s291 = sadd.s32 1, %s287
        $region54: #{tpu_custom_call.1} parent=39 // loop_footer_branch
          %286 = sbr.rel target = $region50
        $region55: #{tpu_custom_call.1} parent=39 // loop_exit
          _
        %v1020 = vpack.c.bf16 %v292, %v292
        %v1021 = vpack.c.bf16 %v293, %v293
        %v1022 = vpack.c.bf16 %v294, %v294
        %v1023 = vpack.c.bf16 %v295, %v295
        %v1024 = vpack.c.bf16 %v296, %v296
        %v1025 = vpack.c.bf16 %v297, %v297
        %v1026 = vpack.c.bf16 %v298, %v298
        %v1027 = vpack.c.bf16 %v299, %v299
        %v1028 = vld [vmem:[%s4] sm:$0xf]
        %v1029 = vld [vmem:[%s4 + $0x4] sm:$0xf]
        %v1030 = vld [vmem:[%s4 + $0x8] sm:$0xf]
        %v1031 = vld [vmem:[%s4 + $0xc] sm:$0xf]
        %v1032 = vld [vmem:[%s4 + $0x10] sm:$0xf]
        %v1033 = vld [vmem:[%s4 + $0x14] sm:$0xf]
        %v1034 = vld [vmem:[%s4 + $0x18] sm:$0xf]
        %v1035 = vld [vmem:[%s4 + $0x1c] sm:$0xf]
        %v1044 = vunpack.c.l.b16 %v1020
        %v1045 = vunpack.c.l.b16 %v1021
        %v1046 = vunpack.c.l.b16 %v1022
        %v1047 = vunpack.c.l.b16 %v1023
        %v1048 = vunpack.c.l.b16 %v1024
        %v1049 = vunpack.c.l.b16 %v1025
        %v1050 = vunpack.c.l.b16 %v1026
        %v1051 = vunpack.c.l.b16 %v1027
        %vm1052 = vcmask 1041409
        %v1053 = vsel %vm1052, %v1045, %v1044
        %vm1054 = vcmask 1042434
        %v1055 = vsel %vm1054, %v1046, %v1053
        %vm1056 = vcmask 1043459
        %v1057 = vsel %vm1056, %v1047, %v1055
        %vm1058 = vcmask 1044484
        %v1059 = vsel %vm1058, %v1048, %v1057
        %vm1060 = vcmask 1045509
        %v1061 = vsel %vm1060, %v1049, %v1059
        %vm1062 = vcmask 1046534
        %v1063 = vsel %vm1062, %v1050, %v1061
        %vm1064 = vcmask 1047559
        %v1065 = vsel %vm1064, %v1051, %v1063
        %v1066 = vpack.c.b16 %v1065, %v1065
        %v1075 = vunpack.c.l.b16 %v1028
        %v1076 = vunpack.c.l.b16 %v1029
        %v1077 = vunpack.c.l.b16 %v1030
        %v1078 = vunpack.c.l.b16 %v1031
        %v1079 = vunpack.c.l.b16 %v1032
        %v1080 = vunpack.c.l.b16 %v1033
        %v1081 = vunpack.c.l.b16 %v1034
        %v1082 = vunpack.c.l.b16 %v1035
        %v1083 = vpack.c.b16 %v1076, %v1075
        %v1084 = vpack.c.b16 %v1078, %v1077
        %v1085 = vpack.c.b16 %v1080, %v1079
        %v1086 = vpack.c.b16 %v1082, %v1081
        %vm1091 = vcmask 523264
        %v1093 = vsel %vm1091, %v1066, 0
        %1095 = vmatprep.subr.bf16.mxu0 0
        %1096 = vmatpush1.bf16.msra.mxu0 %v1083
        %1097 = vmatprep.subr.bf16.mxu0 0
        %1098 = vmatpush1.bf16.msra.mxu0 %v1084
        %1099 = vmatprep.subr.bf16.mxu0 0
        %1100 = vmatpush1.bf16.msra.mxu0 %v1085
        %1101 = vmatprep.subr.bf16.mxu0 0
        %1102 = vmatpush1.bf16.msra.mxu0 %v1086
        %1103 = vmatprep.subr.bf16.mxu0 0
        %1104 = vmatpush1.bf16.msra.mxu0 0
        %1105 = vmatprep.subr.bf16.mxu0 0
        %1106 = vmatpush1.bf16.msra.mxu0 0
        %1107 = vmatprep.subr.bf16.mxu0 0
        %1108 = vmatpush1.bf16.msra.mxu0 0
        %1109 = vmatprep.subr.bf16.mxu0 0
        %1110 = vmatpush1.bf16.msra.mxu0 0
        %1111 = vmatprep.subr.bf16.mxu0 0
        %1112 = vmatpush1.bf16.msra.mxu0 0
        %1113 = vmatprep.subr.bf16.mxu0 0
        %1114 = vmatpush1.bf16.msra.mxu0 0
        %1115 = vmatprep.subr.bf16.mxu0 0
        %1116 = vmatpush1.bf16.msra.mxu0 0
        %1117 = vmatprep.subr.bf16.mxu0 0
        %1118 = vmatpush1.bf16.msra.mxu0 0
        %1119 = vmatprep.subr.bf16.mxu0 0
        %1120 = vmatpush1.bf16.msra.mxu0 0
        %1121 = vmatprep.subr.bf16.mxu0 0
        %1122 = vmatpush1.bf16.msra.mxu0 0
        %1123 = vmatprep.subr.bf16.mxu0 0
        %1124 = vmatpush1.bf16.msra.mxu0 0
        %1125 = vmatprep.subr.bf16.mxu0 0
        %1126 = vmatpush1.bf16.msra.mxu0 0
        %1127 = vmatprep.mubr.bf16.mxu0 0
        %1128 = vmatmul.mubr.bf16.gmra.mrb[0].mxu0 %v1093
        %v1129 = vpop.f32.mrb[0].mxu0
        %v1130 = vadd.f32 0.0, %v1129
        %v1131 = vpop.f32.mrb[0].mxu0
        %v1132 = vpop.f32.mrb[0].mxu0
        %v1133 = vpop.f32.mrb[0].mxu0
        %1134 = vdwg.mxu0
        %1135 = vst [vmem:[%s283] sm:$0xff] %v1130
        %s1136 = sand.u32 %s141, 1
        %s1137 = scalar_lea.sflag [#allocation4], %s1136
        %s1138 = sand.u32 %s141, 1
        %s1139 = smul.addr %s1138, 8
        %s1140 = scalar_lea.vmem [#allocation7], %s1139
        // Predicated region
        $region56: #{tpu_custom_call.1} parent=39 // pred_check
          %p1141 = pneg %p151
        $region57: #{tpu_custom_call.1} parent=39 // pred_check_branch
          %1143 = sbr.rel (%p1141) target = $region59
        $region58: #{tpu_custom_call.1} parent=39 // pred_region
          %s1145 = ssub.s32 128, 128
          %1146 = vsyncadd %s1137, %s1145
          %s1147 = smul.addr %s23, 128
          %s1148 = scalar_lea.hbm %s5, %s1147
          %s1150 = sshll.u32 %s1140, 4
          %s1151 = int_to_ptr.vmem [resolvable:$true] %s1150
          %1153 = dma.vmem_to_hbm [thread:$0]  %s1151, 128, %s1148, %s1137
        $region59: #{tpu_custom_call.1} parent=39 // pred_fallthru
          _
      $region40: #{tpu_custom_call.1} parent=5 // pred_fallthru
        _
      %p1154 = scmp.le.s32.totalorder 2, %s18
      // Predicated region
      $region60: #{tpu_custom_call.1} parent=5 // pred_check
        %p1155 = pneg %p1154
      $region61: #{tpu_custom_call.1} parent=5 // pred_check_branch
        %1157 = sbr.rel (%p1155) target = $region63
      $region62: #{tpu_custom_call.1} parent=5 // pred_region
        %s1158 = ssub.s32 %s18, 2
        // Predicated region
        $region64: #{tpu_custom_call.1} parent=62 // pred_check
          %p1159 = pneg %p157
        $region65: #{tpu_custom_call.1} parent=62 // pred_check_branch
          %1161 = sbr.rel (%p1159) target = $region67
        $region66: #{tpu_custom_call.1} parent=62 // pred_region
          %s1162 = sand.u32 %s142, 1
          %s1163 = scalar_lea.sflag [#allocation4], %s1162
          %s1164 = sand.u32 %s142, 1
          %s1165 = smul.addr %s1164, 8
          %s1166 = scalar_lea.vmem [#allocation7], %s1165
          %1167 = dma.done %s1163, 128
        $region67: #{tpu_custom_call.1} parent=62 // pred_fallthru
          _
      $region63: #{tpu_custom_call.1} parent=5 // pred_fallthru
        _
    $region6: #{tpu_custom_call.1} parent=1 // loop_footer
      %s22 = sadd.s32 1, %s18
    $region7: #{tpu_custom_call.1} parent=1 // loop_footer_branch
      %17 = sbr.rel target = $region3
    $region8: #{tpu_custom_call.1} parent=1 // loop_exit
      _
    %1168 = vsyncpa [#allocation3], 1
    %s1169 = scalar_lea.sflag [#allocation3], 1
    %1170 = vsyncpa %s1169, 1
    %1171 = vsyncpa [#allocation6], 1
    %1172 = vsyncpa [#allocation4], 1
    %s1173 = scalar_lea.sflag [#allocation4], 1
    %1174 = vsyncpa %s1173, 1

</llo_original>
